<compile_context>
chip_gen: v6e
topology: v6e:2x2x1
jax: 0.10.0
libtpu: 0.0.40
codegen_flags: <defaults>
</compile_context>

<pallas_src>
import functools

import numpy as np
import jax
import jax.numpy as jnp
from jax.experimental import pallas as pl
from jax.experimental.pallas import tpu as pltpu


# ----------------------- host-side constant builders ------------------------

def _interp_index_weights(in_size, out_size):
    # PyTorch F.interpolate(mode='bilinear', align_corners=False) source-index
    # math (F.upsample defaults to align_corners=False behaviour).
    i = np.arange(out_size, dtype=np.float64)
    src = (i + 0.5) * (float(in_size) / float(out_size)) - 0.5
    src = np.maximum(src, 0.0)
    i0 = np.minimum(np.floor(src).astype(np.int64), in_size - 1)
    i1 = np.minimum(i0 + 1, in_size - 1)
    w1 = (src - i0).astype(np.float32)
    w0 = (1.0 - w1).astype(np.float32)
    return i0, i1, w0, w1


def _interp_matrix(in_size, out_size):
    i0, i1, w0, w1 = _interp_index_weights(in_size, out_size)
    U = np.zeros((out_size, in_size), np.float32)
    rows = np.arange(out_size)
    U[rows, i0] += w0
    U[rows, i1] += w1
    return U                                          # (out_size, in_size)


def _tap_masks(hout, wout):
    # mask[t, p*wout+q] = 1 iff 3x3 tap t=(dh,dw) reads an in-bounds pixel.
    p = np.arange(hout)[:, None]
    q = np.arange(wout)[None, :]
    rows = []
    for dh in (-1, 0, 1):
        for dw in (-1, 0, 1):
            ok = ((p + dh >= 0) & (p + dh < hout) &
                  (q + dw >= 0) & (q + dw < wout))
            rows.append(ok.astype(np.float32).reshape(-1))
    return np.stack(rows, axis=0)                     # (9, hout*wout)


# -------------------- roll-direction probe (robustness) ----------------------

def _roll_probe_kernel(x_ref, o_ref):
    o_ref[...] = pltpu.roll(x_ref[...], 1, 1)


@functools.lru_cache(maxsize=None)
def _roll_shift_sign():
    """Determine pltpu.roll's rotation convention once on the device.

    The tap construction needs result[i] == x[i + off]; this makes the static
    shift amounts robust to either rotation direction.  Runs one trivial
    (8, 128) kernel, eagerly, exactly once.
    """
    x = jax.lax.broadcasted_iota(jnp.float32, (8, 128), 1)
    y = pl.pallas_call(
        _roll_probe_kernel,
        out_shape=jax.ShapeDtypeStruct((8, 128), jnp.float32),
    )(x)
    # numpy convention: roll(x, 1)[..., 0] == x[..., -1] == 127.
    return -1 if float(y[0, 0]) == 127.0 else 1


# ------------------------------- kernels -------------------------------------

def _upsample_conv_kernel(x_ref, kT_ref, masks_ref, wbig_ref,
                          conv_ref, rsum_ref, rcss_ref, patches_ref,
                          *, b_blk, cin, cout, wout, roll_sign):
    """Batch block: 3x bilinear upsample + 3x3 conv + per-row BN partials."""
    BC = b_blk * cin
    P = masks_ref.shape[1]

    # 3x bilinear upsample == ONE lane-aligned MXU matmul (bf16 in, f32 acc).
    xb = x_ref[...].reshape(BC, -1)                        # (b_blk*Cin, Pin)
    up = jnp.dot(xb, kT_ref[...],
                 preferred_element_type=jnp.float32)       # (BC, P) f32

    # im2col: 9 taps = lane rotations (XLU) of `up`, zeroed at the H/W borders
    # by the precomputed masks (roll wraparound only lands on masked pixels).
    # Taps go straight into a persistent VMEM scratch (no concatenate relayout).
    t = 0
    for dh in (-1, 0, 1):
        for dw in (-1, 0, 1):
            off = dh * wout + dw
            tap = up if off == 0 else pltpu.roll(up, (roll_sign * off) % P, 1)
            patches_ref[t * BC:(t + 1) * BC, :] = tap * masks_ref[t:t + 1, :]
            t += 1

    # 3x3 conv == one matmul with the batch-block-diagonal weight
    # (rows (b, o), contraction index (t, b, c)).  Conv bias is dropped: a
    # per-channel constant is exactly cancelled by training-mode BatchNorm.
    conv = jnp.dot(wbig_ref[...], patches_ref[...],
                   preferred_element_type=jnp.float32)     # (b_blk*Cout, P)
    conv_ref[...] = conv.reshape(b_blk, cout, P)

    # Per-(batch, channel) partials for training-mode BatchNorm: row sums and
    # row-centered sums-of-squares (combined exactly in the wrapper; avoids
    # the E[x^2]-mean^2 cancellation problem).
    row_sum = jnp.sum(conv, axis=1, keepdims=True)         # (b_blk*Cout, 1)
    centered = conv - row_sum * (1.0 / P)
    row_css = jnp.sum(centered * centered, axis=1, keepdims=True)
    rsum_ref[...] = row_sum.reshape(b_blk, cout, 1)
    rcss_ref[...] = row_css.reshape(b_blk, cout, 1)


def _bn_prelu_kernel(conv_ref, scale_ref, shift_ref, a_ref, y_ref):
    """Streaming fused BatchNorm affine + PReLU, lane-dense (P = k*128)."""
    z = conv_ref[...] * scale_ref[...] + shift_ref[...]    # (Cout,1) broadcasts
    a = a_ref[0, 0]                                        # PReLU slope (SMEM)
    y_ref[...] = jnp.where(z >= 0.0, z, a * z)


# ------------------------------- wrapper --------------------------------------

def upsample_forward(x, params, *, b_blk=None):
    B, Cin, H, W = x.shape
    Hout, Wout = 3 * H, 3 * W
    Pin, P = H * W, Hout * Wout

    w = params['conv_w'].astype(jnp.float32)               # (Cout, Cin, 3, 3)
    Cout = w.shape[0]

    if b_blk is None:
        # Fold the batch into the matmul M dim (main MXU-utilization lever);
        # for larger batches keep >= 2 grid steps so the "parallel" batch axis
        # can also be split across v7x's two TensorCores.
        b_blk = B if B <= 2 else (B // 2 if B % 2 == 0 else 1)
    assert B % b_blk == 0, "batch must be divisible by the batch block"
    nb = B // b_blk
    BC = b_blk * Cin
    roll_sign = _roll_shift_sign()

    # Host-side constants.  Unpadded Kronecker interpolation matrix: at this
    # size (Pin=256, P=2304=18*128) it is 1.2 MB in bf16 and exactly
    # lane-aligned; for much larger H*W switch to the separable (U_h, U_w) form.
    K = np.kron(_interp_matrix(H, Hout), _interp_matrix(W, Wout))   # (P, Pin)
    kT = jnp.asarray(K.T, dtype=jnp.bfloat16)                       # (Pin, P)
    masks = jnp.asarray(_tap_masks(Hout, Wout))                     # (9, P) f32

    # conv weight (O, I, 3, 3) -> [o, t, c] -> batch-block-diagonal weight so a
    # single matmul produces the whole batch block (K stays tiny, so the extra
    # zero columns cost no additional MXU passes).
    w_tap = jnp.transpose(w, (0, 2, 3, 1)).reshape(Cout, 9, Cin)
    w_big = jnp.einsum('bB,otc->botBc', jnp.eye(b_blk, dtype=jnp.float32),
                       w_tap).reshape(b_blk * Cout, 9 * BC)

    x2 = x.reshape(B, Cin, Pin).astype(jnp.bfloat16)

    cparams = pltpu.CompilerParams(dimension_semantics=("parallel",),
                                   vmem_limit_bytes=32 * 1024 * 1024)

    conv_out, rsums, rcss = pl.pallas_call(
        functools.partial(_upsample_conv_kernel, b_blk=b_blk, cin=Cin,
                          cout=Cout, wout=Wout, roll_sign=roll_sign),
        grid=(nb,),
        in_specs=[
            pl.BlockSpec((b_blk, Cin, Pin), lambda i: (i, 0, 0)),
            # Constant operands (constant index_maps): the pipeline fetches them
            # once and skips re-DMA on later steps.
            pl.BlockSpec((Pin, P), lambda i: (0, 0)),
            pl.BlockSpec((9, P), lambda i: (0, 0)),
            pl.BlockSpec((b_blk * Cout, 9 * BC), lambda i: (0, 0)),
        ],
        out_specs=(
            pl.BlockSpec((b_blk, Cout, P), lambda i: (i, 0, 0)),
            pl.BlockSpec((b_blk, Cout, 1), lambda i: (i, 0, 0)),
            pl.BlockSpec((b_blk, Cout, 1), lambda i: (i, 0, 0)),
        ),
        out_shape=(
            jax.ShapeDtypeStruct((B, Cout, P), jnp.float32),
            jax.ShapeDtypeStruct((B, Cout, 1), jnp.float32),
            jax.ShapeDtypeStruct((B, Cout, 1), jnp.float32),
        ),
        scratch_shapes=[pltpu.VMEM((9 * BC, P), jnp.float32)],
        compiler_params=cparams,
    )(x2, kT, masks, w_big)

    # Training-mode BatchNorm statistics from the tiny per-row partials (plain
    # JAX; a few hundred scalars).  Exact pooled-variance combine of the
    # per-row centered sums-of-squares (no E[x^2]-mean^2 cancellation).
    n = float(B * P)
    mean = jnp.sum(rsums, axis=0) / n                          # (Cout, 1)
    row_means = rsums / float(P)                               # (B, Cout, 1)
    var = (jnp.sum(rcss, axis=0)
           + float(P) * jnp.sum((row_means - mean) ** 2, axis=0)) / n
    inv_std = jax.lax.rsqrt(var + 1e-5)
    scale = params['bn_g'].astype(jnp.float32).reshape(Cout, 1) * inv_std
    shift = params['bn_b'].astype(jnp.float32).reshape(Cout, 1) - mean * scale

    y = pl.pallas_call(
        _bn_prelu_kernel,
        grid=(nb,),
        in_specs=[
            pl.BlockSpec((b_blk, Cout, P), lambda i: (i, 0, 0)),
            pl.BlockSpec((Cout, 1), lambda i: (0, 0)),
            pl.BlockSpec((Cout, 1), lambda i: (0, 0)),
            pl.BlockSpec((1, 1), lambda i: (0, 0),
                         memory_space=pltpu.MemorySpace.SMEM),
        ],
        out_specs=pl.BlockSpec((b_blk, Cout, P), lambda i: (i, 0, 0)),
        out_shape=jax.ShapeDtypeStruct((B, Cout, P), jnp.float32),
        input_output_aliases={0: 0},          # write y in place over conv_out
        compiler_params=cparams,
    )(conv_out, scale, shift,
      params['prelu_a'].astype(jnp.float32).reshape(1, 1))

    return y.reshape(B, Cout, Hout, Wout)


# ------------------------------- reference ------------------------------------

def upsample_reference(x, params):
    """Pure-JAX reference mirroring the PyTorch forward (training-mode BN)."""
    B, Cin, H, W = x.shape
    Hout, Wout = 3 * H, 3 * W
    i0h, i1h, w0h, w1h = _interp_index_weights(H, Hout)
    i0w, i1w, w0w, w1w = _interp_index_weights(W, Wout)
    xh = (x[:, :, i0h, :] * w0h[None, None, :, None]
          + x[:, :, i1h, :] * w1h[None, None, :, None])
    up = (xh[:, :, :, i0w] * w0w[None, None, None, :]
          + xh[:, :, :, i1w] * w1w[None, None, None, :])
    conv = jax.lax.conv_general_dilated(
        up, params['conv_w'], window_strides=(1, 1), padding=((1, 1), (1, 1)),
        dimension_numbers=('NCHW', 'OIHW', 'NCHW'))
    conv = conv + params['conv_b'][None, :, None, None]
    mean = jnp.mean(conv, axis=(0, 2, 3), keepdims=True)
    var = jnp.mean((conv - mean) ** 2, axis=(0, 2, 3), keepdims=True)
    z = ((conv - mean) * jax.lax.rsqrt(var + 1e-5)
         * params['bn_g'][None, :, None, None]
         + params['bn_b'][None, :, None, None])
    a = params['prelu_a'][0]
    return jnp.where(z >= 0, z, a * z)


if __name__ == "__main__":
    B, Cin, Cout, H, W = 2, 4, 8, 16, 16
    key = jax.random.PRNGKey(0)
    ks = jax.random.split(key, 8)

    params = {
        'conv_w': 0.2 * jax.random.normal(ks[0], (Cout, Cin, 3, 3), jnp.float32),
        'conv_b': 0.1 * jax.random.normal(ks[1], (Cout,), jnp.float32),
        'bn_g': 1.0 + 0.1 * jax.random.normal(ks[2], (Cout,), jnp.float32),
        'bn_b': 0.05 * jax.random.normal(ks[3], (Cout,), jnp.float32),
        'prelu_a': jnp.full((1,), 0.25, jnp.float32),   # nn.PReLU() default
    }
    x = jax.random.normal(ks[4], (B, Cin, H, W), jnp.float32)

    y = upsample_forward(x, params)
    jax.block_until_ready(y)

    y_ref = upsample_reference(x, params)
    assert y.shape == (B, Cout, 3 * H, 3 * W)
    err = float(np.max(np.abs(np.asarray(y) - np.asarray(y_ref))))
    # bf16 MXU path for the upsample -> slightly relaxed atol vs. the f32 ref.
    assert np.allclose(np.asarray(y), np.asarray(y_ref),
                       rtol=1e-2, atol=2e-2), err

    print("KERNEL_OK")
</pallas_src>

<mosaic_0001>
module attributes {stable_mosaic.version = 11 : i64} {
  func.func @_roll_probe_kernel(%arg0: memref<8x128xf32, #tpu.memory_space<vmem>>, %arg1: memref<8x128xf32, #tpu.memory_space<vmem>>) attributes {dimension_semantics = [], scalar_prefetch = 0 : i64, scratch_operands = 0 : i64, tpu.core_type = #tpu.core_type<tc>} {
    %c0 = arith.constant 0 : index
    %c0_0 = arith.constant 0 : index
    %0 = vector.load %arg0[%c0, %c0_0] : memref<8x128xf32, #tpu.memory_space<vmem>>, vector<8x128xf32>
    %c1_i32 = arith.constant 1 : i32
    %1 = tpu.dynamic_rotate %0 by %c1_i32 dim 1 : vector<8x128xf32>, i32 -> vector<8x128xf32>
    %c0_1 = arith.constant 0 : index
    %c0_2 = arith.constant 0 : index
    %2 = vector.load %arg1[%c0_1, %c0_2] : memref<8x128xf32, #tpu.memory_space<vmem>>, vector<8x128xf32>
    tpu.vector_store %arg1[%c0_1, %c0_2], %1 {strides = array<i32>} : memref<8x128xf32, #tpu.memory_space<vmem>>, vector<8x128xf32>,
    return
  }
}

</mosaic_0001>

<llo_original>
// kernel: tpu_custom_call.1
$region0: #{tpu_custom_call.1}
  #allocation0 [shape = 'u32[]', space=smem, size = 0x4, offset = 0x4, fixed_abs, tag = 'smem constant byte address 0x4 - core index']
  #allocation1 [shape = 'u32[144,128]{1,0:T(1,128)}', space=vmem, size = 0x12000, scoped, tag = 'internal scratch']
  %s0 = inlined_call_operand.hbm [shape: f32[8,128], index: 0, kind: input, shape index: {}]
  %s1 = inlined_call_operand.hbm [shape: f32[8,128], index: 1, kind: output, shape index: {}]
  %s2 = sld [smem:[#allocation0]]
  $region18: #{tpu_custom_call.1} parent=0
    _
  %s4 = ssub.s32 1, %s2
  %s5 = scalar_select 0, %s4, %s2
  $region1: #{tpu_custom_call.1} parent=0
    #allocation2 [shape = 'u8[4096]{0}', space=vmem, size = 0x1000, scoped, tag = 'input window, operand 0, single buffered']
    #allocation3 [shape = 's32[1]{0}', space=sflag, size = 0x4, scoped, tag = 'scoped memory for tpu_custom_call.1']
    #allocation4 [shape = 's32[1]{0}', space=sflag, size = 0x4, scoped, tag = 'scoped memory for tpu_custom_call.1']
    #allocation5 [shape = 'u8[4096]{0}', space=vmem, size = 0x1000, scoped, tag = 'output window, operand 0, single buffered']
    %6 = vsyncpa [#allocation3], 0
    %7 = vsyncpa [#allocation4], 0
    // Predicated region
    $region2: #{tpu_custom_call.1} parent=1 // pred_check
      _
    $region3: #{tpu_custom_call.1} parent=1 // pred_check_branch
      %9 = sbr.rel (0) target = $region5
    $region4: #{tpu_custom_call.1} parent=1 // pred_region
      %s11 = ssub.s32 128, 128
      %12 = vsyncadd [#allocation3], %s11
      %s14 = sshll.u32 [#allocation2], 4
      %s15 = int_to_ptr.vmem [resolvable:$true] %s14
      %17 = dma.hbm_to_vmem [thread:$0]  %s0, 128, %s15, [#allocation3]
    $region5: #{tpu_custom_call.1} parent=1 // pred_fallthru
      _
    // Predicated region
    $region6: #{tpu_custom_call.1} parent=1 // pred_check
      _
    $region7: #{tpu_custom_call.1} parent=1 // pred_check_branch
      %19 = sbr.rel (0) target = $region9
    $region8: #{tpu_custom_call.1} parent=1 // pred_region
      %20 = dma.done [#allocation3], 128
    $region9: #{tpu_custom_call.1} parent=1 // pred_fallthru
      _
    %v21 = vld [vmem:[#allocation2] sm:$0xff]
    %22 = vrot.lane.b32.xlu0 %v21, 1
    %v23 = vpop.permute.xlu0 %22
    %24 = vst [vmem:[#allocation5] sm:$0xff] %v23
    // Predicated region
    $region10: #{tpu_custom_call.1} parent=1 // pred_check
      _
    $region11: #{tpu_custom_call.1} parent=1 // pred_check_branch
      %26 = sbr.rel (0) target = $region13
    $region12: #{tpu_custom_call.1} parent=1 // pred_region
      %s28 = ssub.s32 128, 128
      %29 = vsyncadd [#allocation4], %s28
      %s31 = sshll.u32 [#allocation5], 4
      %s32 = int_to_ptr.vmem [resolvable:$true] %s31
      %34 = dma.vmem_to_hbm [thread:$0]  %s32, 128, %s1, [#allocation4]
    $region13: #{tpu_custom_call.1} parent=1 // pred_fallthru
      _
    // Predicated region
    $region14: #{tpu_custom_call.1} parent=1 // pred_check
      _
    $region15: #{tpu_custom_call.1} parent=1 // pred_check_branch
      %36 = sbr.rel (0) target = $region17
    $region16: #{tpu_custom_call.1} parent=1 // pred_region
      %37 = dma.done [#allocation4], 128
    $region17: #{tpu_custom_call.1} parent=1 // pred_fallthru
      _
    %38 = vsyncpa [#allocation3], 1
    %39 = vsyncpa [#allocation4], 1

</llo_original>
